<compile_context>
chip_gen: v6e
topology: v6e:2x2x1
jax: 0.10.0
libtpu: 0.0.40
codegen_flags: <defaults>
</compile_context>

<pallas_src>
import jax
import jax.numpy as jnp
from jax.experimental import pallas as pl
from jax.experimental.pallas import tpu as pltpu

LANES = 128
SUBLANES = 8


def fused_dense_kernel(x_ref, w_ref, b_ref, o_ref):
    # out = x @ W_fused + b_fused   (f32 accumulation on the MXU)
    o = jnp.dot(x_ref[...], w_ref[...], preferred_element_type=jnp.float32)
    o_ref[...] = (o + b_ref[...]).astype(o_ref.dtype)


def _round_up(n, m):
    return ((n + m - 1) // m) * m


@jax.jit
def model_dense_forward(x, w1, b1, w2, b2):
    """Forward of ModelDense: d2(d1(x)).

    x : [B, 10] f32
    w1: [100, 10], b1: [100]        (torch nn.Linear layout: (out_features, in_features))
    w2: [n_out, 100], b2: [n_out]
    returns [B, n_out] f32
    """
    B, F = x.shape
    n_out = w2.shape[0]

    # Fuse the two affine layers outside the kernel (mathematically identical,
    # rounding differs by a few ulps -- verified against the sequential reference).
    w_fused = jnp.dot(w1.T, w2.T, preferred_element_type=jnp.float32)        # [10, n_out]
    b_fused = jnp.dot(b1, w2.T, preferred_element_type=jnp.float32) + b2     # [n_out]

    # Lane-dense / sublane-aligned padding for the kernel's VMEM slabs.
    n_pad = _round_up(max(n_out, LANES), LANES)
    b_pad = _round_up(B, SUBLANES)

    x_p = jnp.zeros((b_pad, F), x.dtype).at[:B, :].set(x)
    w_p = jnp.zeros((F, n_pad), jnp.float32).at[:, :n_out].set(w_fused)
    b_p = jnp.zeros((1, n_pad), jnp.float32).at[:, :n_out].set(b_fused)

    out_pad = pl.pallas_call(
        fused_dense_kernel,
        out_shape=jax.ShapeDtypeStruct((b_pad, n_pad), jnp.float32),
        in_specs=[
            pl.BlockSpec(memory_space=pltpu.MemorySpace.VMEM),
            pl.BlockSpec(memory_space=pltpu.MemorySpace.VMEM),
            pl.BlockSpec(memory_space=pltpu.MemorySpace.VMEM),
        ],
        out_specs=pl.BlockSpec(memory_space=pltpu.MemorySpace.VMEM),
    )(x_p, w_p, b_p)

    return out_pad[:B, :n_out]


def init_params(key, n_output=5):
    """Deterministic init mimicking nn.Linear default (uniform +-1/sqrt(fan_in))."""
    k1, k2, k3, k4 = jax.random.split(key, 4)
    bound1 = 1.0 / jnp.sqrt(10.0)
    bound2 = 1.0 / jnp.sqrt(100.0)
    # Stored PyTorch-style as (out_features, in_features).
    w1 = jax.random.uniform(k1, (100, 10), jnp.float32, -bound1, bound1)
    b1 = jax.random.uniform(k2, (100,), jnp.float32, -bound1, bound1)
    w2 = jax.random.uniform(k3, (n_output, 100), jnp.float32, -bound2, bound2)
    b2 = jax.random.uniform(k4, (n_output,), jnp.float32, -bound2, bound2)
    return w1, b1, w2, b2


if __name__ == "__main__":
    key = jax.random.PRNGKey(0)
    k_in, k_param = jax.random.split(key)

    B, n_output = 8, 5
    x = jax.random.normal(k_in, (B, 10), jnp.float32)      # batch['input']
    w1, b1, w2, b2 = init_params(k_param, n_output)

    out = model_dense_forward(x, w1, b1, w2, b2)
    out = jax.block_until_ready(out)

    # Pure-JAX reference of the PyTorch forward: d2(d1(x))
    ref = (x @ w1.T + b1) @ w2.T + b2
    assert out.shape == (B, n_output)
    assert jnp.allclose(out, ref, atol=1e-5, rtol=1e-5), "mismatch vs reference"

    print("KERNEL_OK")
</pallas_src>

<mosaic_0001>
module attributes {stable_mosaic.version = 11 : i64} {
  func.func @fused_dense_kernel(%arg0: memref<8x10xf32, #tpu.memory_space<vmem>>, %arg1: memref<10x128xf32, #tpu.memory_space<vmem>>, %arg2: memref<1x128xf32, #tpu.memory_space<vmem>>, %arg3: memref<8x128xf32, #tpu.memory_space<vmem>>) attributes {dimension_semantics = [], scalar_prefetch = 0 : i64, scratch_operands = 0 : i64, tpu.core_type = #tpu.core_type<tc>} {
    %c0 = arith.constant 0 : index
    %c0_0 = arith.constant 0 : index
    %0 = vector.load %arg0[%c0, %c0_0] : memref<8x10xf32, #tpu.memory_space<vmem>>, vector<8x10xf32>
    %c0_1 = arith.constant 0 : index
    %c0_2 = arith.constant 0 : index
    %1 = vector.load %arg1[%c0_1, %c0_2] : memref<10x128xf32, #tpu.memory_space<vmem>>, vector<10x128xf32>
    %cst = arith.constant dense<0.000000e+00> : vector<8x128xf32>
    %2 = tpu.matmul %0, %1, %cst {dimension_numbers = #tpu.dot_dimension_numbers<[1], [0], [0], [1], [0, 0, 1, 1], [], []>} : vector<8x10xf32>, vector<10x128xf32>, vector<8x128xf32> -> vector<8x128xf32>
    %c0_3 = arith.constant 0 : index
    %c0_4 = arith.constant 0 : index
    %3 = vector.load %arg2[%c0_3, %c0_4] : memref<1x128xf32, #tpu.memory_space<vmem>>, vector<1x128xf32>
    %4 = vector.broadcast %3 : vector<1x128xf32> to vector<8x128xf32>
    %5 = arith.addf %2, %4 : vector<8x128xf32>
    %c0_5 = arith.constant 0 : index
    %c0_6 = arith.constant 0 : index
    %6 = vector.load %arg3[%c0_5, %c0_6] : memref<8x128xf32, #tpu.memory_space<vmem>>, vector<8x128xf32>
    tpu.vector_store %arg3[%c0_5, %c0_6], %5 {strides = array<i32>} : memref<8x128xf32, #tpu.memory_space<vmem>>, vector<8x128xf32>,
    return
  }
}

</mosaic_0001>

<llo_original>
// kernel: model_dense_forward.1
$region0: #{model_dense_forward.1}
  #allocation0 [shape = 'u32[]', space=smem, size = 0x4, offset = 0x4, fixed_abs, tag = 'smem constant byte address 0x4 - core index']
  #allocation1 [shape = 'u32[144,128]{1,0:T(1,128)}', space=vmem, size = 0x12000, scoped, tag = 'internal scratch']
  %s0 = inlined_call_operand.vmem [shape: f32[8,10], index: 0, kind: input, shape index: {}]
  %s1 = inlined_call_operand.vmem [shape: f32[10,128], index: 1, kind: input, shape index: {}]
  %s2 = inlined_call_operand.vmem [shape: f32[1,128], index: 2, kind: input, shape index: {}]
  %s3 = inlined_call_operand.hbm [shape: f32[8,128], index: 3, kind: output, shape index: {}]
  %s4 = sld [smem:[#allocation0]]
  $region22: #{model_dense_forward.1} parent=0
    _
  %s6 = ssub.s32 1, %s4
  %s7 = scalar_select 0, %s6, %s4
  $region1: #{model_dense_forward.1} parent=0
    #allocation2 [shape = 'u8[4096]{0}', space=vmem, size = 0x1000, scoped, tag = 'output window, operand 0, single buffered']
    #allocation3 [shape = 's32[1]{0}', space=sflag, size = 0x4, scoped, tag = 'scoped memory for model_dense_forward.1']
    %8 = vsyncpa [#allocation3], 0
    // Predicated region
    $region2: #{model_dense_forward.1} parent=1 // pred_check
      _
    $region3: #{model_dense_forward.1} parent=1 // pred_check_branch
      %10 = sbr.rel (0) target = $region5
    $region4: #{model_dense_forward.1} parent=1 // pred_region
      _
    $region5: #{model_dense_forward.1} parent=1 // pred_fallthru
      _
    // Predicated region
    $region6: #{model_dense_forward.1} parent=1 // pred_check
      _
    $region7: #{model_dense_forward.1} parent=1 // pred_check_branch
      %12 = sbr.rel (0) target = $region9
    $region8: #{model_dense_forward.1} parent=1 // pred_region
      _
    $region9: #{model_dense_forward.1} parent=1 // pred_fallthru
      _
    // Predicated region
    $region10: #{model_dense_forward.1} parent=1 // pred_check
      _
    $region11: #{model_dense_forward.1} parent=1 // pred_check_branch
      %14 = sbr.rel (0) target = $region13
    $region12: #{model_dense_forward.1} parent=1 // pred_region
      _
    $region13: #{model_dense_forward.1} parent=1 // pred_fallthru
      _
    %v15 = vld [vmem:[%s0] sm:$0xff]
    %v16 = vld [vmem:[%s1] sm:$0xff]
    %v17 = vld [vmem:[%s1 + $0x8] sm:$0x3]
    %v18 = vld [vmem:[%s2] sm:$0x1]
    %v20 = vlaneseq
    %v21 = vshrl.u32 %v20, 7
    %v22 = vsub.s32 0, %v21
    %v23 = vrot.slane %v18, %v22
    %vm25 = vcmask 80896
    %v27 = vsel %vm25, %v15, 0
    %vm29 = vcmask 1041408
    %v31 = vsel %vm29, %v17, 0
    %33 = vmatprep.subr.mxu0 0.0
    %34 = vmatpush1.msra.mxu0 0.0
    %35 = vmatprep.subr.mxu0 0.0
    %36 = vmatpush1.msra.mxu0 0.0
    %37 = vmatprep.subr.mxu0 0.0
    %38 = vmatpush1.msra.mxu0 0.0
    %39 = vmatprep.subr.mxu0 0.0
    %40 = vmatpush1.msra.mxu0 0.0
    %41 = vmatprep.subr.mxu0 0.0
    %42 = vmatpush1.msra.mxu0 0.0
    %43 = vmatprep.subr.mxu0 0.0
    %44 = vmatpush1.msra.mxu0 0.0
    %45 = vmatprep.subr.mxu0 0.0
    %46 = vmatpush1.msra.mxu0 0.0
    %47 = vmatprep.subr.mxu0 0.0
    %48 = vmatpush1.msra.mxu0 0.0
    %49 = vmatprep.subr.mxu0 0.0
    %50 = vmatpush1.msra.mxu0 0.0
    %51 = vmatprep.subr.mxu0 0.0
    %52 = vmatpush1.msra.mxu0 0.0
    %53 = vmatprep.subr.mxu0 0.0
    %54 = vmatpush1.msra.mxu0 0.0
    %55 = vmatprep.subr.mxu0 0.0
    %56 = vmatpush1.msra.mxu0 0.0
    %57 = vmatprep.subr.mxu0 0.0
    %58 = vmatpush1.msra.mxu0 0.0
    %59 = vmatprep.subr.mxu0 0.0
    %60 = vmatpush1.msra.mxu0 0.0
    %61 = vmatprep.subr.mxu0 0.0
    %62 = vmatpush1.msra.mxu0 %v31
    %63 = vmatprep.subr.mxu0 0.0
    %64 = vmatpush1.msra.mxu0 %v16
    %65 = vmatprep.subr.mxu0 0.0
    %66 = vmatpush2.msra.mxu0 0.0
    %67 = vmatprep.subr.mxu0 0.0
    %68 = vmatpush2.msra.mxu0 0.0
    %69 = vmatprep.subr.mxu0 0.0
    %70 = vmatpush2.msra.mxu0 0.0
    %71 = vmatprep.subr.mxu0 0.0
    %72 = vmatpush2.msra.mxu0 0.0
    %73 = vmatprep.subr.mxu0 0.0
    %74 = vmatpush2.msra.mxu0 0.0
    %75 = vmatprep.subr.mxu0 0.0
    %76 = vmatpush2.msra.mxu0 0.0
    %77 = vmatprep.subr.mxu0 0.0
    %78 = vmatpush2.msra.mxu0 0.0
    %79 = vmatprep.subr.mxu0 0.0
    %80 = vmatpush2.msra.mxu0 0.0
    %81 = vmatprep.subr.mxu0 0.0
    %82 = vmatpush2.msra.mxu0 0.0
    %83 = vmatprep.subr.mxu0 0.0
    %84 = vmatpush2.msra.mxu0 0.0
    %85 = vmatprep.subr.mxu0 0.0
    %86 = vmatpush2.msra.mxu0 0.0
    %87 = vmatprep.subr.mxu0 0.0
    %88 = vmatpush2.msra.mxu0 0.0
    %89 = vmatprep.subr.mxu0 0.0
    %90 = vmatpush2.msra.mxu0 0.0
    %91 = vmatprep.subr.mxu0 0.0
    %92 = vmatpush2.msra.mxu0 0.0
    %93 = vmatprep.subr.mxu0 0.0
    %94 = vmatpush2.msra.mxu0 0.0
    %95 = vmatprep.subr.mxu0 0.0
    %96 = vmatpush2.msra.mxu0 0.0
    %97 = vmatprep.mubr.f32.mxu0 0.0
    %98 = vmatmul.mubr.f32.gmra.mxu0 %v27
    %v99 = vpop.f32.mrf.mxu0
    %v100 = vadd.f32 %v23, %v99
    %v101 = vpop.f32.mrf.mxu0
    %102 = vdwg.mxu0
    %103 = vst [vmem:[#allocation2] sm:$0xff] %v100
    // Predicated region
    $region14: #{model_dense_forward.1} parent=1 // pred_check
      _
    $region15: #{model_dense_forward.1} parent=1 // pred_check_branch
      %105 = sbr.rel (0) target = $region17
    $region16: #{model_dense_forward.1} parent=1 // pred_region
      %s107 = ssub.s32 128, 128
      %108 = vsyncadd [#allocation3], %s107
      %s110 = sshll.u32 [#allocation2], 4
      %s111 = int_to_ptr.vmem [resolvable:$true] %s110
      %113 = dma.vmem_to_hbm [thread:$0]  %s111, 128, %s3, [#allocation3]
    $region17: #{model_dense_forward.1} parent=1 // pred_fallthru
      _
    // Predicated region
    $region18: #{model_dense_forward.1} parent=1 // pred_check
      _
    $region19: #{model_dense_forward.1} parent=1 // pred_check_branch
      %115 = sbr.rel (0) target = $region21
    $region20: #{model_dense_forward.1} parent=1 // pred_region
      %116 = dma.done [#allocation3], 128
    $region21: #{model_dense_forward.1} parent=1 // pred_fallthru
      _
    %117 = vsyncpa [#allocation3], 1

</llo_original>
